<compile_context>
chip_gen: v7x
topology: tpu7x:2x2x1
jax: 0.10.0
libtpu: 0.0.40
codegen_flags: <defaults>
</compile_context>

<pallas_src>
import functools

import jax
import jax.numpy as jnp
from jax.experimental import pallas as pl
from jax.experimental.pallas import tpu as pltpu

_NEG_INF = -1e30  # large finite negative: avoids inf-inf NaNs in the online max


def _round_up(n, m):
    return ((n + m - 1) // m) * m


def _logits_stats_kernel(x_ref, w_ref, b_ref, logits_ref, s_ref, m_ref, l_ref,
                         *, vocab, tile_v, n_v_tiles):
    """Pass 1: logits tile + online-softmax stats (one matmul per tile)."""
    j = pl.program_id(1)

    @pl.when(j == 0)
    def _init():
        m_ref[...] = jnp.full(m_ref.shape, _NEG_INF, dtype=jnp.float32)
        l_ref[...] = jnp.zeros(l_ref.shape, dtype=jnp.float32)

    logits = jnp.dot(x_ref[...].astype(jnp.bfloat16),
                     w_ref[...].astype(jnp.bfloat16),
                     preferred_element_type=jnp.float32)
    logits = logits + b_ref[...]              # bias broadcast over rows
    if vocab % tile_v != 0:
        # Ragged last vocab tile: mask padded columns in-kernel instead of
        # padding the (D, V) weight in HBM (jnp.where also squashes any
        # garbage/NaN read from the out-of-bounds boundary region).
        col = j * tile_v + jax.lax.broadcasted_iota(jnp.int32, logits.shape, 1)
        logits = jnp.where(col < vocab, logits, _NEG_INF)

    logits_ref[...] = logits                  # staged once; rescaled in pass 2

    m_prev = m_ref[...]
    m_new = jnp.maximum(m_prev, jnp.max(logits, axis=-1, keepdims=True))
    l_ref[...] = (l_ref[...] * jnp.exp(m_prev - m_new)
                  + jnp.sum(jnp.exp(logits - m_new), axis=-1, keepdims=True))
    m_ref[...] = m_new

    @pl.when(j == n_v_tiles - 1)
    def _finalize():
        # Fold normalization into the exponent: softmax = exp(logit - s).
        s_ref[...] = m_ref[...] + jnp.log(l_ref[...])


def _normalize_kernel(logits_ref, s_ref, o_ref):
    """Pass 2: elementwise rescale (no weight traffic, no matmul recompute)."""
    o_ref[...] = jnp.exp(logits_ref[...] - s_ref[...]).astype(o_ref.dtype)


def _vmem_limit_bytes():
    try:
        cap = int(pltpu.get_tpu_info().vmem_capacity_bytes)
    except Exception:
        cap = 64 * 1024 * 1024  # conservative (v7x) default
    # ~80% of physical VMEM: ~51 MiB on v7x, ~102 MiB on v5e/v6e.
    return min(int(cap * 0.8), 112 * 1024 * 1024)


def output_layer(x, w, b, *, out_dtype=jnp.float32, tile_rows=None, tile_v=None):
    """softmax(x @ w + b, axis=-1).

    x: (B, S, D); w: (D, V) -- pass a bf16 weight cached OUTSIDE the call to
    halve weight-streaming bytes; b: (V,).  Returns (B, S, V) in out_dtype
    (use bfloat16 when the consumer is sampling/argmax/top-k).
    """
    B, S, D = x.shape
    Dw, V = w.shape
    assert Dw == D and b.shape == (V,)
    rows = B * S

    x2 = x.reshape(rows, D)                    # metadata-only reshape
    b2 = b.astype(jnp.float32).reshape(1, V)   # tiny (V,) copy only

    x_bytes = jnp.dtype(x.dtype).itemsize
    w_bytes = jnp.dtype(w.dtype).itemsize
    out_bytes = jnp.dtype(out_dtype).itemsize
    vmem_limit = _vmem_limit_bytes()

    # ---- tile sizing -------------------------------------------------------
    # Rows: multiple of 16 (bf16 sublane pack), up to 512 so arithmetic
    # intensity per streamed weight byte clears the v6e/v7x ridge point; keep
    # the double-buffered x tile within ~30% of VMEM for very large d_model.
    if tile_rows is None:
        tile_rows = min(_round_up(rows, 16), 512)
        while tile_rows > 16 and 2 * tile_rows * D * x_bytes > int(0.30 * vmem_limit):
            tile_rows = max(16, tile_rows // 2)
    assert tile_rows % 16 == 0, "tile_rows must be a multiple of 16"

    # Vocab: lane-dense tiles, preferring multiples of 256 (256x256 MXU on
    # v6e/v7x), sized so the double-buffered weight tile fits ~45% of VMEM.
    if tile_v is None:
        tv = int(0.45 * vmem_limit) // (2 * D * w_bytes)
        tv = (tv // 256) * 256 if tv >= 256 else 128
        tile_v = max(128, min(_round_up(V, 128), tv, 4096))
    assert tile_v % 128 == 0, "tile_v must be a multiple of 128"

    n_row_tiles = pl.cdiv(rows, tile_rows)
    n_v_tiles = pl.cdiv(V, tile_v)
    rows_cov = n_row_tiles * tile_rows
    v_cov = n_v_tiles * tile_v

    # TODO(synk): tile the reduction (d_model) axis as a third grid dimension
    # if D ever grows beyond what a single (tile_rows, D) x-tile can hold.

    # Weight pipeline depth: 3-deep only when there are enough vocab tiles and
    # the third buffer still fits alongside x/logits/bias/scratch buffers.
    fixed_vmem = (2 * tile_rows * D * x_bytes + 2 * tile_rows * tile_v * 4
                  + 2 * tile_v * 4 + 4 * tile_rows * 4)
    w_spec_kwargs = {}
    if n_v_tiles >= 3 and (3 * D * tile_v * w_bytes + fixed_vmem
                           <= int(0.85 * vmem_limit)):
        w_spec_kwargs["pipeline_mode"] = pl.Buffered(3)
    w_spec = pl.BlockSpec((D, tile_v), lambda i, j: (0, j), **w_spec_kwargs)

    cost1 = pl.CostEstimate(
        flops=2 * rows_cov * D * v_cov,
        transcendentals=rows_cov * v_cov,
        bytes_accessed=(n_row_tiles * D * v_cov * w_bytes   # weight, per row tile
                        + rows_cov * D * x_bytes            # x, once per row tile
                        + n_row_tiles * v_cov * 4           # bias
                        + rows_cov * v_cov * 4              # staged logits write
                        + rows_cov * 4))                    # per-row stats

    logits, s = pl.pallas_call(
        functools.partial(_logits_stats_kernel, vocab=V, tile_v=tile_v,
                          n_v_tiles=n_v_tiles),
        out_shape=(jax.ShapeDtypeStruct((rows, V), jnp.float32),
                   jax.ShapeDtypeStruct((rows, 1), jnp.float32)),
        grid_spec=pltpu.PrefetchScalarGridSpec(
            num_scalar_prefetch=0,
            grid=(n_row_tiles, n_v_tiles),          # reduction (vocab) axis last
            in_specs=[
                pl.BlockSpec((tile_rows, D), lambda i, j: (i, 0)),
                w_spec,
                pl.BlockSpec((1, tile_v), lambda i, j: (0, j)),
            ],
            out_specs=[
                pl.BlockSpec((tile_rows, tile_v), lambda i, j: (i, j)),
                pl.BlockSpec((tile_rows, 1), lambda i, j: (i, 0)),
            ],
            scratch_shapes=[
                pltpu.VMEM((tile_rows, 1), jnp.float32),   # running row max
                pltpu.VMEM((tile_rows, 1), jnp.float32),   # running row denom
            ],
        ),
        compiler_params=pltpu.CompilerParams(
            dimension_semantics=("parallel", "arbitrary"),
            vmem_limit_bytes=vmem_limit),
        cost_estimate=cost1,
    )(x2, w, b2)

    # ---- pass 2: elementwise normalize (HBM-bound; larger lane-dense tiles) --
    tile_v2 = min(_round_up(V, 128), 4096)
    while tile_v2 > 128 and 2 * tile_rows * tile_v2 * (4 + out_bytes) > int(0.6 * vmem_limit):
        tile_v2 //= 2
    tile_v2 = max(128, (tile_v2 // 128) * 128)
    n_v2 = pl.cdiv(V, tile_v2)

    cost2 = pl.CostEstimate(
        flops=rows_cov * v_cov,
        transcendentals=rows_cov * v_cov,
        bytes_accessed=rows_cov * v_cov * (4 + out_bytes) + rows_cov * 4)

    out = pl.pallas_call(
        _normalize_kernel,
        out_shape=jax.ShapeDtypeStruct((rows, V), out_dtype),
        grid_spec=pltpu.PrefetchScalarGridSpec(
            num_scalar_prefetch=0,
            grid=(n_row_tiles, n_v2),
            in_specs=[
                pl.BlockSpec((tile_rows, tile_v2), lambda i, j: (i, j)),
                pl.BlockSpec((tile_rows, 1), lambda i, j: (i, 0)),
            ],
            out_specs=pl.BlockSpec((tile_rows, tile_v2), lambda i, j: (i, j)),
        ),
        compiler_params=pltpu.CompilerParams(
            dimension_semantics=("parallel", "parallel"),
            vmem_limit_bytes=vmem_limit),
        cost_estimate=cost2,
    )(logits, s)

    return out.reshape(B, S, V)


if __name__ == "__main__":
    # Small shapes consistent with the module: d_model=32, vocab_size=128,
    # x of shape (batch=2, seq=8, d_model=32).
    d_model, vocab_size = 32, 128
    batch, seq = 2, 8

    key = jax.random.PRNGKey(0)
    kx, kw, kb = jax.random.split(key, 3)

    x = jax.random.normal(kx, (batch, seq, d_model), dtype=jnp.float32)
    # nn.Linear-style init: U(-1/sqrt(d_model), 1/sqrt(d_model))
    bound = 1.0 / (d_model ** 0.5)
    w = jax.random.uniform(kw, (d_model, vocab_size), minval=-bound, maxval=bound,
                           dtype=jnp.float32)
    b = jax.random.uniform(kb, (vocab_size,), minval=-bound, maxval=bound,
                           dtype=jnp.float32)

    # Cache the bf16 weight once, OUTSIDE the forward call (halves weight DMA;
    # no per-call (D, V) cast/pad materialization in HBM).
    w_bf16 = w.astype(jnp.bfloat16)

    out = output_layer(x, w_bf16, b)
    out = jax.block_until_ready(out)

    # Reference (same semantics as the PyTorch module). Tolerance accounts for
    # the bf16 matmul operands (f32 accumulation, exact log-sum-exp normalize).
    ref = jax.nn.softmax(jnp.einsum("bsd,dv->bsv", x, w) + b, axis=-1)
    assert out.shape == (batch, seq, vocab_size)
    max_err = float(jnp.max(jnp.abs(out - ref)))
    assert jnp.allclose(out, ref, atol=2e-3, rtol=0), max_err
    assert jnp.allclose(jnp.sum(out, axis=-1), 1.0, atol=1e-3)

    print("KERNEL_OK")
</pallas_src>

<mosaic_0001>
module attributes {stable_mosaic.version = 11 : i64} {
  func.func @_logits_stats_kernel(%arg0: i32, %arg1: i32, %arg2: memref<16x32xf32, #tpu.memory_space<vmem>>, %arg3: memref<32x128xbf16, #tpu.memory_space<vmem>>, %arg4: memref<1x128xf32, #tpu.memory_space<vmem>>, %arg5: memref<16x128xf32, #tpu.memory_space<vmem>>, %arg6: memref<16x1xf32, #tpu.memory_space<vmem>>, %arg7: memref<16x1xf32, #tpu.memory_space<vmem>>, %arg8: memref<16x1xf32, #tpu.memory_space<vmem>>) attributes {dimension_semantics = [#tpu.dimension_semantics<parallel>, #tpu.dimension_semantics<arbitrary>], iteration_bounds = array<i64: 1, 1>, scalar_prefetch = 0 : i64, scratch_operands = 2 : i64, tpu.core_type = #tpu.core_type<tc>, window_params = [{transform_indices = @transform_0, window_bounds = array<i64: 16, 32>}, {transform_indices = @transform_1, window_bounds = array<i64: 32, 128>}, {transform_indices = @transform_2, window_bounds = array<i64: 1, 128>}, {transform_indices = @transform_3, window_bounds = array<i64: 16, 128>}, {transform_indices = @transform_4, window_bounds = array<i64: 16, 1>}]} {
    %c0_i32 = arith.constant 0 : i32
    %0 = arith.cmpi eq, %arg1, %c0_i32 : i32
    %1 = arith.extui %0 : i1 to i32
    %c0_i32_0 = arith.constant 0 : i32
    %2 = arith.cmpi ne, %1, %c0_i32_0 : i32
    scf.if %2 {
      %cst_20 = arith.constant -1.000000e+30 : f32
      %30 = vector.broadcast %cst_20 : f32 to vector<16x1xf32>
      %c0_21 = arith.constant 0 : index
      %c0_22 = arith.constant 0 : index
      %31 = vector.load %arg7[%c0_21, %c0_22] : memref<16x1xf32, #tpu.memory_space<vmem>>, vector<16x1xf32>
      tpu.vector_store %arg7[%c0_21, %c0_22], %30 {strides = array<i32>} : memref<16x1xf32, #tpu.memory_space<vmem>>, vector<16x1xf32>,
      %cst_23 = arith.constant 0.000000e+00 : f32
      %32 = vector.broadcast %cst_23 : f32 to vector<16x1xf32>
      %c0_24 = arith.constant 0 : index
      %c0_25 = arith.constant 0 : index
      %33 = vector.load %arg8[%c0_24, %c0_25] : memref<16x1xf32, #tpu.memory_space<vmem>>, vector<16x1xf32>
      tpu.vector_store %arg8[%c0_24, %c0_25], %32 {strides = array<i32>} : memref<16x1xf32, #tpu.memory_space<vmem>>, vector<16x1xf32>,
    } else {
    }
    %c0 = arith.constant 0 : index
    %c0_1 = arith.constant 0 : index
    %3 = vector.load %arg2[%c0, %c0_1] : memref<16x32xf32, #tpu.memory_space<vmem>>, vector<16x32xf32>
    %4 = arith.truncf %3 : vector<16x32xf32> to vector<16x32xbf16>
    %c0_2 = arith.constant 0 : index
    %c0_3 = arith.constant 0 : index
    %5 = vector.load %arg3[%c0_2, %c0_3] : memref<32x128xbf16, #tpu.memory_space<vmem>>, vector<32x128xbf16>
    %cst = arith.constant dense<0.000000e+00> : vector<16x128xf32>
    %6 = tpu.matmul %4, %5, %cst {dimension_numbers = #tpu.dot_dimension_numbers<[1], [0], [0], [1], [0, 0, 1, 1], [], []>} : vector<16x32xbf16>, vector<32x128xbf16>, vector<16x128xf32> -> vector<16x128xf32>
    %c0_4 = arith.constant 0 : index
    %c0_5 = arith.constant 0 : index
    %7 = vector.load %arg4[%c0_4, %c0_5] : memref<1x128xf32, #tpu.memory_space<vmem>>, vector<1x128xf32>
    %8 = vector.broadcast %7 : vector<1x128xf32> to vector<16x128xf32>
    %9 = arith.addf %6, %8 : vector<16x128xf32>
    %c0_6 = arith.constant 0 : index
    %c0_7 = arith.constant 0 : index
    %10 = vector.load %arg5[%c0_6, %c0_7] : memref<16x128xf32, #tpu.memory_space<vmem>>, vector<16x128xf32>
    tpu.vector_store %arg5[%c0_6, %c0_7], %9 {strides = array<i32>} : memref<16x128xf32, #tpu.memory_space<vmem>>, vector<16x128xf32>,
    %c0_8 = arith.constant 0 : index
    %c0_9 = arith.constant 0 : index
    %11 = vector.load %arg7[%c0_8, %c0_9] : memref<16x1xf32, #tpu.memory_space<vmem>>, vector<16x1xf32>
    %cst_10 = arith.constant dense<0xFF800000> : vector<16xf32>
    %12 = vector.multi_reduction <maximumf>, %9, %cst_10 [1] : vector<16x128xf32> to vector<16xf32>
    %13 = vector.shape_cast %12 : vector<16xf32> to vector<16x1xf32>
    %14 = arith.maximumf %11, %13 : vector<16x1xf32>
    %c0_11 = arith.constant 0 : index
    %c0_12 = arith.constant 0 : index
    %15 = vector.load %arg8[%c0_11, %c0_12] : memref<16x1xf32, #tpu.memory_space<vmem>>, vector<16x1xf32>
    %16 = arith.subf %11, %14 : vector<16x1xf32>
    %17 = math.exp %16 : vector<16x1xf32>
    %18 = arith.mulf %15, %17 : vector<16x1xf32>
    %19 = vector.broadcast %14 : vector<16x1xf32> to vector<16x128xf32>
    %20 = arith.subf %9, %19 : vector<16x128xf32>
    %21 = math.exp %20 : vector<16x128xf32>
    %cst_13 = arith.constant dense<0.000000e+00> : vector<16xf32>
    %22 = vector.multi_reduction <add>, %21, %cst_13 [1] : vector<16x128xf32> to vector<16xf32>
    %23 = vector.shape_cast %22 : vector<16xf32> to vector<16x1xf32>
    %24 = arith.addf %18, %23 : vector<16x1xf32>
    %c0_14 = arith.constant 0 : index
    %c0_15 = arith.constant 0 : index
    %25 = vector.load %arg8[%c0_14, %c0_15] : memref<16x1xf32, #tpu.memory_space<vmem>>, vector<16x1xf32>
    tpu.vector_store %arg8[%c0_14, %c0_15], %24 {strides = array<i32>} : memref<16x1xf32, #tpu.memory_space<vmem>>, vector<16x1xf32>,
    %c0_16 = arith.constant 0 : index
    %c0_17 = arith.constant 0 : index
    %26 = vector.load %arg7[%c0_16, %c0_17] : memref<16x1xf32, #tpu.memory_space<vmem>>, vector<16x1xf32>
    tpu.vector_store %arg7[%c0_16, %c0_17], %14 {strides = array<i32>} : memref<16x1xf32, #tpu.memory_space<vmem>>, vector<16x1xf32>,
    %c0_i32_18 = arith.constant 0 : i32
    %27 = arith.cmpi eq, %arg1, %c0_i32_18 : i32
    %28 = arith.extui %27 : i1 to i32
    %c0_i32_19 = arith.constant 0 : i32
    %29 = arith.cmpi ne, %28, %c0_i32_19 : i32
    scf.if %29 {
      %c0_20 = arith.constant 0 : index
      %c0_21 = arith.constant 0 : index
      %30 = vector.load %arg7[%c0_20, %c0_21] : memref<16x1xf32, #tpu.memory_space<vmem>>, vector<16x1xf32>
      %c0_22 = arith.constant 0 : index
      %c0_23 = arith.constant 0 : index
      %31 = vector.load %arg8[%c0_22, %c0_23] : memref<16x1xf32, #tpu.memory_space<vmem>>, vector<16x1xf32>
      %32 = math.log %31 : vector<16x1xf32>
      %33 = arith.addf %30, %32 : vector<16x1xf32>
      %c0_24 = arith.constant 0 : index
      %c0_25 = arith.constant 0 : index
      %34 = vector.load %arg6[%c0_24, %c0_25] : memref<16x1xf32, #tpu.memory_space<vmem>>, vector<16x1xf32>
      tpu.vector_store %arg6[%c0_24, %c0_25], %33 {strides = array<i32>} : memref<16x1xf32, #tpu.memory_space<vmem>>, vector<16x1xf32>,
    } else {
    }
    return
  }
  func.func @transform_0(%arg0: i32, %arg1: i32) -> (i32, i32) {
    %c0_i32 = arith.constant 0 : i32
    %c0_i32_0 = arith.constant 0 : i32
    return %arg0, %c0_i32 : i32, i32
  }
  func.func @transform_1(%arg0: i32, %arg1: i32) -> (i32, i32) {
    %c0_i32 = arith.constant 0 : i32
    %c0_i32_0 = arith.constant 0 : i32
    return %c0_i32, %arg1 : i32, i32
  }
  func.func @transform_2(%arg0: i32, %arg1: i32) -> (i32, i32) {
    %c0_i32 = arith.constant 0 : i32
    %c0_i32_0 = arith.constant 0 : i32
    return %c0_i32, %arg1 : i32, i32
  }
  func.func @transform_3(%arg0: i32, %arg1: i32) -> (i32, i32) {
    %c0_i32 = arith.constant 0 : i32
    return %arg0, %arg1 : i32, i32
  }
  func.func @transform_4(%arg0: i32, %arg1: i32) -> (i32, i32) {
    %c0_i32 = arith.constant 0 : i32
    %c0_i32_0 = arith.constant 0 : i32
    return %arg0, %c0_i32 : i32, i32
  }
}

</mosaic_0001>

<llo_original>
// kernel: tpu_custom_call.1
$region0: #{tpu_custom_call.1}
  #allocation0 [shape = 'u32[]', space=smem, size = 0x4, offset = 0x4, fixed_abs, tag = 'smem constant byte address 0x4 - core index']
  #allocation1 [shape = 'u32[144,128]{1,0:T(1,128)}', space=vmem, size = 0x12000, scoped, tag = 'internal scratch']
  #allocation2 [shape = 'f32[16,1]{1,0:T(8,128)}', space=vmem, size = 0x2000, scoped, tag = 'scratch operand']
  #allocation3 [shape = 'f32[16,1]{1,0:T(8,128)}', space=vmem, size = 0x2000, scoped, tag = 'scratch operand']
  %s0 = inlined_call_operand.hbm [shape: f32[16,32], index: 0, kind: input, shape index: {}]
  %s1 = inlined_call_operand.hbm [shape: bf16[32,128], index: 1, kind: input, shape index: {}]
  %s2 = inlined_call_operand.vmem [shape: f32[1,128], index: 2, kind: input, shape index: {}]
  %s3 = inlined_call_operand.hbm [shape: f32[16,128], index: 3, kind: output, shape index: {0}]
  %s4 = inlined_call_operand.vmem [shape: f32[16,1], index: 4, kind: output, shape index: {1}]
  %5 = xla_tuple %s3, %s4
  %s6 = sld [smem:[#allocation0]]
  $region46: #{tpu_custom_call.1} parent=0
    _
  %s8 = ssub.s32 1, %s6
  %s9 = scalar_select 0, %s8, %s6
  $region1: #{tpu_custom_call.1} parent=0
    #allocation4 [shape = 'u8[8192]{0}', space=vmem, size = 0x2000, scoped, tag = 'input window, operand 0, single buffered']
    #allocation5 [shape = 's32[1]{0}', space=sflag, size = 0x4, scoped, tag = 'scoped memory for tpu_custom_call.1']
    #allocation6 [shape = 's32[1]{0}', space=sflag, size = 0x4, scoped, tag = 'scoped memory for tpu_custom_call.1']
    #allocation7 [shape = 'u8[8192]{0}', space=vmem, size = 0x2000, scoped, tag = 'input window, operand 1, single buffered']
    #allocation8 [shape = 's32[1]{0}', space=sflag, size = 0x4, scoped, tag = 'scoped memory for tpu_custom_call.1']
    #allocation9 [shape = 'u8[8192]{0}', space=vmem, size = 0x2000, scoped, tag = 'output window, operand 0, single buffered']
    %10 = vsyncpa [#allocation5], 0
    %11 = vsyncpa [#allocation8], 0
    %12 = vsyncpa [#allocation6], 0
    // Predicated region
    $region2: #{tpu_custom_call.1} parent=1 // pred_check
      _
    $region3: #{tpu_custom_call.1} parent=1 // pred_check_branch
      %14 = sbr.rel (0) target = $region5
    $region4: #{tpu_custom_call.1} parent=1 // pred_region
      %s16 = ssub.s32 256, 256
      %17 = vsyncadd [#allocation5], %s16
      %s18 = sshll.u32 [#allocation4], 4
      %s19 = int_to_ptr.vmem [resolvable:$true] %s18
      %24 = dma.hbm_to_vmem [thread:$0]  %s0, 256, %s19, [#allocation5], 128, 128, 8
    $region5: #{tpu_custom_call.1} parent=1 // pred_fallthru
      _
    // Predicated region
    $region6: #{tpu_custom_call.1} parent=1 // pred_check
      _
    $region7: #{tpu_custom_call.1} parent=1 // pred_check_branch
      %26 = sbr.rel (0) target = $region9
    $region8: #{tpu_custom_call.1} parent=1 // pred_region
      %s28 = ssub.s32 256, 256
      %29 = vsyncadd [#allocation8], %s28
      %s30 = sshll.u32 [#allocation7], 4
      %s31 = int_to_ptr.vmem [resolvable:$true] %s30
      %36 = dma.hbm_to_vmem [thread:$0]  %s1, 256, %s31, [#allocation8], 64, 64, 4
    $region9: #{tpu_custom_call.1} parent=1 // pred_fallthru
      _
    // Predicated region
    $region10: #{tpu_custom_call.1} parent=1 // pred_check
      _
    $region11: #{tpu_custom_call.1} parent=1 // pred_check_branch
      %38 = sbr.rel (0) target = $region13
    $region12: #{tpu_custom_call.1} parent=1 // pred_region
      _
    $region13: #{tpu_custom_call.1} parent=1 // pred_fallthru
      _
    // Predicated region
    $region14: #{tpu_custom_call.1} parent=1 // pred_check
      _
    $region15: #{tpu_custom_call.1} parent=1 // pred_check_branch
      %40 = sbr.rel (0) target = $region17
    $region16: #{tpu_custom_call.1} parent=1 // pred_region
      %41 = dma.done [#allocation5], 256
    $region17: #{tpu_custom_call.1} parent=1 // pred_fallthru
      _
    // Predicated region
    $region18: #{tpu_custom_call.1} parent=1 // pred_check
      _
    $region19: #{tpu_custom_call.1} parent=1 // pred_check_branch
      %43 = sbr.rel (0) target = $region21
    $region20: #{tpu_custom_call.1} parent=1 // pred_region
      %44 = dma.done [#allocation8], 256
    $region21: #{tpu_custom_call.1} parent=1 // pred_fallthru
      _
    %p46 = scmp.eq.s32.totalorder 0, 0
    // Predicated region
    $region22: #{tpu_custom_call.1} parent=1 // pred_check
      %p47 = pneg %p46
    $region23: #{tpu_custom_call.1} parent=1 // pred_check_branch
      %49 = sbr.rel (%p47) target = $region25
    $region24: #{tpu_custom_call.1} parent=1 // pred_region
      %vm50 = vcmask 7168
      %51 = vst.msk [vmem:[#allocation2] sm:$0xff] %vm50, -1e+30
      %52 = vst.msk [vmem:[#allocation2 + $0x8] sm:$0xff] %vm50, -1e+30
      %53 = vst.msk [vmem:[#allocation3] sm:$0xff] %vm50, 0.0
      %54 = vst.msk [vmem:[#allocation3 + $0x8] sm:$0xff] %vm50, 0.0
    $region25: #{tpu_custom_call.1} parent=1 // pred_fallthru
      _
    %v55 = vld [vmem:[#allocation4] sm:$0xff]
    %v56 = vld [vmem:[#allocation4 + $0x8] sm:$0xff]
    %v57 = vpack.c.bf16 %v56, %v55
    %v58 = vld [vmem:[#allocation7] sm:$0xf]
    %v59 = vld [vmem:[#allocation7 + $0x4] sm:$0xf]
    %v60 = vld [vmem:[#allocation7 + $0x8] sm:$0xf]
    %v61 = vld [vmem:[#allocation7 + $0xc] sm:$0xf]
    %v62 = vld [vmem:[%s2] sm:$0x1]
    %v64 = vlaneseq
    %v65 = vshrl.u32 %v64, 7
    %v66 = vsub.s32 0, %v65
    %v67 = vrot.slane %v62, %v66
    %v73 = vunpack.c.l.b16 %v58
    %v74 = vunpack.c.l.b16 %v59
    %v75 = vunpack.c.l.b16 %v60
    %v76 = vunpack.c.l.b16 %v61
    %v77 = vpack.c.b16 %v74, %v73
    %v78 = vpack.c.b16 %v76, %v75
    %vm81 = vcmask 261120
    %v83 = vsel %vm81, %v57, 0
    %85 = vmatprep.subr.bf16.mxu0 0
    %86 = vmatpush1.bf16.msra.mxu0 %v77
    %87 = vmatprep.subr.bf16.mxu0 0
    %88 = vmatpush1.bf16.msra.mxu0 %v78
    %89 = vmatprep.subr.bf16.mxu0 0
    %90 = vmatpush1.bf16.msra.mxu0 0
    %91 = vmatprep.subr.bf16.mxu0 0
    %92 = vmatpush1.bf16.msra.mxu0 0
    %93 = vmatprep.subr.bf16.mxu0 0
    %94 = vmatpush1.bf16.msra.mxu0 0
    %95 = vmatprep.subr.bf16.mxu0 0
    %96 = vmatpush1.bf16.msra.mxu0 0
    %97 = vmatprep.subr.bf16.mxu0 0
    %98 = vmatpush1.bf16.msra.mxu0 0
    %99 = vmatprep.subr.bf16.mxu0 0
    %100 = vmatpush1.bf16.msra.mxu0 0
    %101 = vmatprep.subr.bf16.mxu0 0
    %102 = vmatpush1.bf16.msra.mxu0 0
    %103 = vmatprep.subr.bf16.mxu0 0
    %104 = vmatpush1.bf16.msra.mxu0 0
    %105 = vmatprep.subr.bf16.mxu0 0
    %106 = vmatpush1.bf16.msra.mxu0 0
    %107 = vmatprep.subr.bf16.mxu0 0
    %108 = vmatpush1.bf16.msra.mxu0 0
    %109 = vmatprep.subr.bf16.mxu0 0
    %110 = vmatpush1.bf16.msra.mxu0 0
    %111 = vmatprep.subr.bf16.mxu0 0
    %112 = vmatpush1.bf16.msra.mxu0 0
    %113 = vmatprep.subr.bf16.mxu0 0
    %114 = vmatpush1.bf16.msra.mxu0 0
    %115 = vmatprep.subr.bf16.mxu0 0
    %116 = vmatpush1.bf16.msra.mxu0 0
    %117 = vmatprep.mubr.bf16.mxu0 0
    %118 = vmatmul.mubr.bf16.gmra.mrb[0].mxu0 %v83
    %v119 = vpop.f32.mrb[0].mxu0
    %v120 = vadd.f32 %v67, %v119
    %v121 = vpop.f32.mrb[0].mxu0
    %v122 = vpop.f32.mrb[0].mxu0
    %v123 = vadd.f32 %v67, %v122
    %v124 = vpop.f32.mrb[0].mxu0
    %125 = vdwg.mxu0
    %126 = vst [vmem:[#allocation9] sm:$0xff] %v120
    %127 = vst [vmem:[#allocation9 + $0x8] sm:$0xff] %v123
    %v128 = vld [vmem:[#allocation2] sm:$0xff]
    %v129 = vld [vmem:[#allocation2 + $0x8] sm:$0xff]
    %130 = vmax.xlane.f32.xlu0 %v120
    %v131 = vpop.xlane.xlu0 %130
    %132 = vmax.xlane.f32.xlu0 %v123
    %v133 = vpop.xlane.xlu0 %132
    %v134 = vmax.f32 %v128, %v131
    %v135 = vmax.f32 %v129, %v133
    %v136 = vld [vmem:[#allocation3] sm:$0xff]
    %v137 = vld [vmem:[#allocation3 + $0x8] sm:$0xff]
    %v138 = vsub.f32 %v128, %v134
    %v139 = vsub.f32 %v129, %v135
    %v140 = vmul.f32 %v138, 1.442695
    %v141 = vpow.pop %v140
    %v142 = vmul.f32 %v139, 1.442695
    %v143 = vpow.pop %v142
    %v144 = vmul.f32 %v136, %v141
    %v145 = vmul.f32 %v137, %v143
    %147 = vset.pattern.permute.xlu0 0
    %148 = vperm.xlu0 %147, %v134
    %v149 = vpop.permute.xlu0 %148
    %152 = vset.pattern.permute.xlu0 0
    %153 = vperm.xlu0 %152, %v135
    %v154 = vpop.permute.xlu0 %153
    %v156 = vsub.f32 %v120, %v149
    %v157 = vsub.f32 %v123, %v154
    %v158 = vmul.f32 %v156, 1.442695
    %v159 = vpow.pop %v158
    %v160 = vmul.f32 %v157, 1.442695
    %v161 = vpow.pop %v160
    %162 = vadd.xlane.f32.xlu0 %v159
    %v163 = vpop.xlane.xlu0 %162
    %164 = vadd.xlane.f32.xlu0 %v161
    %v165 = vpop.xlane.xlu0 %164
    %v166 = vadd.f32 %v144, %v163
    %v167 = vadd.f32 %v145, %v165
    %vm168 = vcmask 7168
    %169 = vst.msk [vmem:[#allocation3] sm:$0xff] %vm168, %v166
    %170 = vst.msk [vmem:[#allocation3 + $0x8] sm:$0xff] %vm168, %v167
    %171 = vst.msk [vmem:[#allocation2] sm:$0xff] %vm168, %v134
    %172 = vst.msk [vmem:[#allocation2 + $0x8] sm:$0xff] %vm168, %v135
    // Predicated region
    $region26: #{tpu_custom_call.1} parent=1 // pred_check
      %p173 = pneg %p46
    $region27: #{tpu_custom_call.1} parent=1 // pred_check_branch
      %175 = sbr.rel (%p173) target = $region29
    $region28: #{tpu_custom_call.1} parent=1 // pred_region
      %v176 = vld [vmem:[#allocation2] sm:$0xff]
      %v177 = vld [vmem:[#allocation2 + $0x8] sm:$0xff]
      %v178 = vld [vmem:[#allocation3] sm:$0xff]
      %v179 = vld [vmem:[#allocation3 + $0x8] sm:$0xff]
      %v180 = vlog2.pop %v178
      %v181 = vmul.f32 %v180, 0.6931472
      %v182 = vlog2.pop %v179
      %v183 = vmul.f32 %v182, 0.6931472
      %v184 = vadd.f32 %v176, %v181
      %v185 = vadd.f32 %v177, %v183
      %186 = vst.msk [vmem:[%s4] sm:$0xff] %vm168, %v184
      %187 = vst.msk [vmem:[%s4 + $0x8] sm:$0xff] %vm168, %v185
    $region29: #{tpu_custom_call.1} parent=1 // pred_fallthru
      _
    // Predicated region
    $region30: #{tpu_custom_call.1} parent=1 // pred_check
      _
    $region31: #{tpu_custom_call.1} parent=1 // pred_check_branch
      %189 = sbr.rel (0) target = $region33
    $region32: #{tpu_custom_call.1} parent=1 // pred_region
      %s191 = ssub.s32 256, 256
      %192 = vsyncadd [#allocation6], %s191
      %s193 = sshll.u32 [#allocation9], 4
      %s194 = int_to_ptr.vmem [resolvable:$true] %s193
      %199 = dma.vmem_to_hbm [thread:$0]  %s194, 256, %s3, [#allocation6], 128, 128, 8
    $region33: #{tpu_custom_call.1} parent=1 // pred_fallthru
      _
    // Predicated region
    $region34: #{tpu_custom_call.1} parent=1 // pred_check
      _
    $region35: #{tpu_custom_call.1} parent=1 // pred_check_branch
      %201 = sbr.rel (0) target = $region37
    $region36: #{tpu_custom_call.1} parent=1 // pred_region
      _
    $region37: #{tpu_custom_call.1} parent=1 // pred_fallthru
      _
    // Predicated region
    $region38: #{tpu_custom_call.1} parent=1 // pred_check
      _
    $region39: #{tpu_custom_call.1} parent=1 // pred_check_branch
      %203 = sbr.rel (0) target = $region41
    $region40: #{tpu_custom_call.1} parent=1 // pred_region
      %204 = dma.done [#allocation6], 256
    $region41: #{tpu_custom_call.1} parent=1 // pred_fallthru
      _
    // Predicated region
    $region42: #{tpu_custom_call.1} parent=1 // pred_check
      _
    $region43: #{tpu_custom_call.1} parent=1 // pred_check_branch
      %206 = sbr.rel (0) target = $region45
    $region44: #{tpu_custom_call.1} parent=1 // pred_region
      _
    $region45: #{tpu_custom_call.1} parent=1 // pred_fallthru
      _
    %207 = vsyncpa [#allocation5], 1
    %208 = vsyncpa [#allocation8], 1
    %209 = vsyncpa [#allocation6], 1

</llo_original>
